<compile_context>
chip_gen: v7x
topology: tpu7x:2x2x1
jax: 0.10.0
libtpu: 0.0.40
codegen_flags: <defaults>
</compile_context>

<pallas_src>
import functools
import math

import jax
import jax.numpy as jnp
from jax.experimental import pallas as pl
from jax.experimental.pallas import tpu as pltpu

LANE = 128      # TPU lane width (last-dim tile)
SUBLANE = 8     # fp32 sublane tile


def _round_up(n, m):
    return ((n + m - 1) // m) * m


# --------------------------------------------------------------------------- #
# Kernel
# --------------------------------------------------------------------------- #
def _gaussian_policy_kernel(x_ref, p_ref, mu_ref, *, ns, hp):
    """One batch tile: mu = lin_mu(tanh(lin2(tanh(lin1(x))))).

    p_ref is the packed parameter buffer (same block every grid step, so it stays
    VMEM-resident across the whole grid):
      rows [0, ns)              : w1   (n_states_pad, 128)  zero-padded cols
      rows [ns, ns+hp)          : w2   (128, 128)           zero-padded
      rows [ns+hp, ns+2*hp)     : wmu  (128, 128)           zero-padded
      rows [ns+2*hp, +SUBLANE)  : b1 / b2 / bmu in rows 0 / 1 / 2, zero-padded
    All row offsets are multiples of 8 -> sublane-aligned static slices.
    """
    x = x_ref[...]

    w1 = p_ref[0:ns, :]
    w2 = p_ref[ns:ns + hp, :]
    wmu = p_ref[ns + hp:ns + 2 * hp, :]
    b = p_ref[ns + 2 * hp:ns + 2 * hp + SUBLANE, :]
    b1 = b[0:1, :].astype(jnp.float32)
    b2 = b[1:2, :].astype(jnp.float32)
    bmu = b[2:3, :].astype(jnp.float32)

    # lin1 + tanh  (MXU matmul with f32 accumulation; tanh on the EUP in f32).
    # Zero-padded lanes stay exactly 0 through tanh and the downstream matmuls,
    # so padding never contaminates the real outputs.
    h1 = jnp.tanh(jnp.dot(x, w1, preferred_element_type=jnp.float32) + b1)
    # lin2 + tanh
    h2 = jnp.tanh(
        jnp.dot(h1.astype(w2.dtype), w2, preferred_element_type=jnp.float32) + b2)
    # lin_mu
    mu = jnp.dot(h2.astype(wmu.dtype), wmu, preferred_element_type=jnp.float32) + bmu

    mu_ref[...] = mu.astype(mu_ref.dtype)


# --------------------------------------------------------------------------- #
# Parameter packing (call once, outside the hot loop)
# --------------------------------------------------------------------------- #
def pack_params(w1, b1, w2, b2, wmu, bmu):
    """Pack weights/biases into one lane-dense fp32 buffer of shape (P, 128)."""
    n_states, n_hidden = w1.shape
    n_actions = wmu.shape[1]
    assert n_hidden <= LANE and n_actions <= LANE, (
        "single-lane-tile packing assumes n_hidden, n_actions <= 128")

    nsp = _round_up(n_states, SUBLANE)   # sublane-aligned weight-slab offsets
    hp = LANE                            # hidden / action lanes padded to 128

    def pad2(a, rows, cols):
        out = jnp.zeros((rows, cols), jnp.float32)
        return out.at[: a.shape[0], : a.shape[1]].set(a.astype(jnp.float32))

    w1p = pad2(w1, nsp, LANE)
    w2p = pad2(w2, hp, LANE)
    wmup = pad2(wmu, hp, LANE)

    bias = jnp.zeros((SUBLANE, LANE), jnp.float32)
    bias = bias.at[0, :n_hidden].set(b1.reshape(-1).astype(jnp.float32))
    bias = bias.at[1, :n_hidden].set(b2.reshape(-1).astype(jnp.float32))
    bias = bias.at[2, :n_actions].set(bmu.reshape(-1).astype(jnp.float32))

    packed = jnp.concatenate([w1p, w2p, wmup, bias], axis=0)  # (nsp + 2*128 + 8, 128)
    return packed, nsp, hp


# --------------------------------------------------------------------------- #
# Forward wrapper
# --------------------------------------------------------------------------- #
def gaussian_policy_forward(x, packed_params, log_sigma, *,
                            n_actions, n_states_pad, h_pad,
                            block_batch=256, operand_dtype=None):
    """Returns (mus, sigmas) of the Normal distribution.

    operand_dtype: set to jnp.bfloat16 on v6e/v7x for large batches (halves DMA
    bytes, bf16 MXU passes). Accumulation / tanh / bias add stay f32.
    """
    batch, n_states = x.shape

    if operand_dtype is not None:
        x = x.astype(operand_dtype)
        packed_params = packed_params.astype(operand_dtype)

    # Batch tile: multiple of the fp32 sublane, capped at block_batch.
    tb = min(block_batch, _round_up(batch, SUBLANE))
    batch_pad = _round_up(batch, tb)
    if batch_pad != batch or n_states_pad != n_states:
        x = jnp.pad(x, ((0, batch_pad - batch), (0, n_states_pad - n_states)))

    p_rows = packed_params.shape[0]
    grid = (batch_pad // tb,)

    kernel = functools.partial(_gaussian_policy_kernel, ns=n_states_pad, hp=h_pad)

    mu_pad = pl.pallas_call(
        kernel,
        out_shape=jax.ShapeDtypeStruct((batch_pad, LANE), jnp.float32),
        grid=grid,
        in_specs=[
            # x tile, pipelined over the batch axis
            pl.BlockSpec((tb, n_states_pad), lambda i: (i, 0)),
            # packed params: same block for every grid step -> VMEM-resident
            pl.BlockSpec((p_rows, LANE), lambda i: (0, 0)),
        ],
        out_specs=pl.BlockSpec((tb, LANE), lambda i: (i, 0)),
        compiler_params=pltpu.CompilerParams(
            dimension_semantics=("parallel",)),   # megacore on v7x, free elsewhere
    )(x, packed_params)

    mus = mu_pad[:batch, :n_actions]
    # sigma is input-independent: compute once here, broadcast lazily.
    sigmas = jnp.broadcast_to(jnp.exp(log_sigma.astype(jnp.float32)), mus.shape)
    return mus, sigmas


# --------------------------------------------------------------------------- #
# Init (matches the PyTorch module's init for the layers used in forward)
# --------------------------------------------------------------------------- #
def xavier_uniform(key, fan_in, fan_out):
    limit = math.sqrt(6.0 / (fan_in + fan_out))
    return jax.random.uniform(key, (fan_in, fan_out),
                              minval=-limit, maxval=limit, dtype=jnp.float32)


def init_params(key, n_states, n_actions, n_hidden, initial_sigma=0.1):
    k1, k2, k3, kb1, kb2, kb3 = jax.random.split(key, 6)
    # weights stored (in, out); xavier_uniform is symmetric in fan_in/fan_out
    w1 = xavier_uniform(k1, n_states, n_hidden)
    w2 = xavier_uniform(k2, n_hidden, n_hidden)
    wmu = xavier_uniform(k3, n_hidden, n_actions)
    b1 = jax.random.uniform(kb1, (1, n_hidden), minval=-1 / math.sqrt(n_states),
                            maxval=1 / math.sqrt(n_states), dtype=jnp.float32)
    b2 = jax.random.uniform(kb2, (1, n_hidden), minval=-1 / math.sqrt(n_hidden),
                            maxval=1 / math.sqrt(n_hidden), dtype=jnp.float32)
    bmu = jax.random.uniform(kb3, (1, n_actions), minval=-1 / math.sqrt(n_hidden),
                             maxval=1 / math.sqrt(n_hidden), dtype=jnp.float32)
    log_sigma = jnp.full((1, n_actions), math.log(initial_sigma), dtype=jnp.float32)
    return (w1, b1, w2, b2, wmu, bmu, log_sigma)


def _reference(x, w1, b1, w2, b2, wmu, bmu, log_sigma):
    h1 = jnp.tanh(x @ w1 + b1)
    h2 = jnp.tanh(h1 @ w2 + b2)
    mus = h2 @ wmu + bmu
    sig = jnp.broadcast_to(jnp.exp(log_sigma), mus.shape)
    return mus, sig


if __name__ == "__main__":
    n_states, n_actions, n_hidden = 16, 8, 32

    key = jax.random.PRNGKey(0)
    kx, kx2, kp = jax.random.split(key, 3)
    w1, b1, w2, b2, wmu, bmu, log_sigma = init_params(
        kp, n_states, n_actions, n_hidden, initial_sigma=0.1)

    # Pack the parameters once (single contiguous lane-dense buffer).
    packed, nsp, hp = pack_params(w1, b1, w2, b2, wmu, bmu)

    fwd = jax.jit(lambda xx, pp, ls: gaussian_policy_forward(
        xx, pp, ls, n_actions=n_actions, n_states_pad=nsp, h_pad=hp))

    # --- small batch (RL inference-like) ---
    batch = 4
    x = jax.random.normal(kx, (batch, n_states), dtype=jnp.float32)
    mus, sigmas = fwd(x, packed, log_sigma)
    jax.block_until_ready((mus, sigmas))
    mus_ref, sig_ref = _reference(x, w1, b1, w2, b2, wmu, bmu, log_sigma)
    assert mus.shape == (batch, n_actions) and sigmas.shape == (batch, n_actions)
    assert jnp.allclose(mus, mus_ref, atol=1e-5), "mus mismatch (small batch)"
    assert jnp.allclose(sigmas, sig_ref, atol=1e-6), "sigmas mismatch (small batch)"

    # --- larger, non-aligned batch: exercises grid > 1 and batch padding ---
    batch2 = 260
    x2 = jax.random.normal(kx2, (batch2, n_states), dtype=jnp.float32)
    mus2, sigmas2 = fwd(x2, packed, log_sigma)
    jax.block_until_ready((mus2, sigmas2))
    mus2_ref, sig2_ref = _reference(x2, w1, b1, w2, b2, wmu, bmu, log_sigma)
    assert mus2.shape == (batch2, n_actions) and sigmas2.shape == (batch2, n_actions)
    assert jnp.allclose(mus2, mus2_ref, atol=1e-5), "mus mismatch (large batch)"
    assert jnp.allclose(sigmas2, sig2_ref, atol=1e-6), "sigmas mismatch (large batch)"

    print("KERNEL_OK")
</pallas_src>

<mosaic_0001>
module attributes {stable_mosaic.version = 11 : i64} {
  func.func @_gaussian_policy_kernel(%arg0: i32, %arg1: memref<8x16xf32, #tpu.memory_space<vmem>>, %arg2: memref<280x128xf32, #tpu.memory_space<vmem>>, %arg3: memref<8x128xf32, #tpu.memory_space<vmem>>) attributes {dimension_semantics = [#tpu.dimension_semantics<parallel>], iteration_bounds = array<i64: 1>, scalar_prefetch = 0 : i64, scratch_operands = 0 : i64, tpu.core_type = #tpu.core_type<tc>, window_params = [{transform_indices = @transform_0, window_bounds = array<i64: 8, 16>}, {pipeline_mode = #tpu.pipeline_mode<synchronous>, transform_indices = @transform_1, window_bounds = array<i64: 280, 128>}, {transform_indices = @transform_2, window_bounds = array<i64: 8, 128>}]} {
    %c0 = arith.constant 0 : index
    %c0_0 = arith.constant 0 : index
    %0 = vector.load %arg1[%c0, %c0_0] : memref<8x16xf32, #tpu.memory_space<vmem>>, vector<8x16xf32>
    %c0_1 = arith.constant 0 : index
    %c0_2 = arith.constant 0 : index
    %1 = vector.load %arg2[%c0_1, %c0_2] : memref<280x128xf32, #tpu.memory_space<vmem>>, vector<16x128xf32>
    %c16 = arith.constant 16 : index
    %c0_3 = arith.constant 0 : index
    %2 = vector.load %arg2[%c16, %c0_3] : memref<280x128xf32, #tpu.memory_space<vmem>>, vector<128x128xf32>
    %c144 = arith.constant 144 : index
    %c0_4 = arith.constant 0 : index
    %3 = vector.load %arg2[%c144, %c0_4] : memref<280x128xf32, #tpu.memory_space<vmem>>, vector<128x128xf32>
    %c272 = arith.constant 272 : index
    %c0_5 = arith.constant 0 : index
    %4 = vector.load %arg2[%c272, %c0_5] : memref<280x128xf32, #tpu.memory_space<vmem>>, vector<8x128xf32>
    %5 = vector.extract_strided_slice %4 {offsets = [0, 0], sizes = [1, 128], strides = [1, 1]} : vector<8x128xf32> to vector<1x128xf32>
    %6 = vector.extract_strided_slice %4 {offsets = [1, 0], sizes = [1, 128], strides = [1, 1]} : vector<8x128xf32> to vector<1x128xf32>
    %7 = vector.extract_strided_slice %4 {offsets = [2, 0], sizes = [1, 128], strides = [1, 1]} : vector<8x128xf32> to vector<1x128xf32>
    %cst = arith.constant dense<0.000000e+00> : vector<8x128xf32>
    %8 = tpu.matmul %0, %1, %cst {dimension_numbers = #tpu.dot_dimension_numbers<[1], [0], [0], [1], [0, 0, 1, 1], [], []>} : vector<8x16xf32>, vector<16x128xf32>, vector<8x128xf32> -> vector<8x128xf32>
    %9 = vector.broadcast %5 : vector<1x128xf32> to vector<8x128xf32>
    %10 = arith.addf %8, %9 : vector<8x128xf32>
    %11 = math.tanh %10 : vector<8x128xf32>
    %cst_6 = arith.constant dense<0.000000e+00> : vector<8x128xf32>
    %12 = tpu.matmul %11, %2, %cst_6 {dimension_numbers = #tpu.dot_dimension_numbers<[1], [0], [0], [1], [0, 0, 1, 1], [], []>} : vector<8x128xf32>, vector<128x128xf32>, vector<8x128xf32> -> vector<8x128xf32>
    %13 = vector.broadcast %6 : vector<1x128xf32> to vector<8x128xf32>
    %14 = arith.addf %12, %13 : vector<8x128xf32>
    %15 = math.tanh %14 : vector<8x128xf32>
    %cst_7 = arith.constant dense<0.000000e+00> : vector<8x128xf32>
    %16 = tpu.matmul %15, %3, %cst_7 {dimension_numbers = #tpu.dot_dimension_numbers<[1], [0], [0], [1], [0, 0, 1, 1], [], []>} : vector<8x128xf32>, vector<128x128xf32>, vector<8x128xf32> -> vector<8x128xf32>
    %17 = vector.broadcast %7 : vector<1x128xf32> to vector<8x128xf32>
    %18 = arith.addf %16, %17 : vector<8x128xf32>
    %c0_8 = arith.constant 0 : index
    %c0_9 = arith.constant 0 : index
    %19 = vector.load %arg3[%c0_8, %c0_9] : memref<8x128xf32, #tpu.memory_space<vmem>>, vector<8x128xf32>
    tpu.vector_store %arg3[%c0_8, %c0_9], %18 {strides = array<i32>} : memref<8x128xf32, #tpu.memory_space<vmem>>, vector<8x128xf32>,
    return
  }
  func.func @transform_0(%arg0: i32) -> (i32, i32) {
    %c0_i32 = arith.constant 0 : i32
    %c0_i32_0 = arith.constant 0 : i32
    return %arg0, %c0_i32 : i32, i32
  }
  func.func @transform_1(%arg0: i32) -> (i32, i32) {
    %c0_i32 = arith.constant 0 : i32
    %c0_i32_0 = arith.constant 0 : i32
    %c0_i32_1 = arith.constant 0 : i32
    return %c0_i32, %c0_i32_0 : i32, i32
  }
  func.func @transform_2(%arg0: i32) -> (i32, i32) {
    %c0_i32 = arith.constant 0 : i32
    %c0_i32_0 = arith.constant 0 : i32
    return %arg0, %c0_i32 : i32, i32
  }
}

</mosaic_0001>

<llo_original>
// kernel: _lambda_.1
$region0: #{_lambda_.1}
  #allocation0 [shape = 'u32[]', space=smem, size = 0x4, offset = 0x4, fixed_abs, tag = 'smem constant byte address 0x4 - core index']
  #allocation1 [shape = 'u32[144,128]{1,0:T(1,128)}', space=vmem, size = 0x12000, scoped, tag = 'internal scratch']
  %s0 = inlined_call_operand.vmem [shape: f32[8,16], index: 0, kind: input, shape index: {}]
  %s1 = inlined_call_operand.hbm [shape: f32[280,128], index: 1, kind: input, shape index: {}]
  %s2 = inlined_call_operand.vmem [shape: f32[8,128], index: 2, kind: output, shape index: {}]
  %s3 = sld [smem:[#allocation0]]
  $region22: #{_lambda_.1} parent=0
    _
  %s5 = ssub.s32 1, %s3
  %s6 = scalar_select 0, %s5, %s3
  $region1: #{_lambda_.1} parent=0
    #allocation2 [shape = 'u8[143360]{0}', space=vmem, size = 0x23000, scoped, tag = 'input window, operand 1, single buffered']
    #allocation3 [shape = 's32[1]{0}', space=sflag, size = 0x4, scoped, tag = 'scoped memory for _lambda_.1']
    %7 = vsyncpa [#allocation3], 0
    // Predicated region
    $region2: #{_lambda_.1} parent=1 // pred_check
      _
    $region3: #{_lambda_.1} parent=1 // pred_check_branch
      %9 = sbr.rel (0) target = $region5
    $region4: #{_lambda_.1} parent=1 // pred_region
      _
    $region5: #{_lambda_.1} parent=1 // pred_fallthru
      _
    // Predicated region
    $region6: #{_lambda_.1} parent=1 // pred_check
      _
    $region7: #{_lambda_.1} parent=1 // pred_check_branch
      %11 = sbr.rel (0) target = $region9
    $region8: #{_lambda_.1} parent=1 // pred_region
      %s13 = ssub.s32 4480, 4480
      %14 = vsyncadd [#allocation3], %s13
      %s15 = sshll.u32 [#allocation2], 4
      %s16 = int_to_ptr.vmem [resolvable:$true] %s15
      %21 = dma.hbm_to_vmem [thread:$0]  %s1, 4480, %s16, [#allocation3], 128, 128, 8
    $region9: #{_lambda_.1} parent=1 // pred_fallthru
      _
    // Predicated region
    $region10: #{_lambda_.1} parent=1 // pred_check
      _
    $region11: #{_lambda_.1} parent=1 // pred_check_branch
      %23 = sbr.rel (0) target = $region13
    $region12: #{_lambda_.1} parent=1 // pred_region
      %24 = dma.done [#allocation3], 4480
    $region13: #{_lambda_.1} parent=1 // pred_fallthru
      _
    %v25 = vld [vmem:[%s0] sm:$0xff]
    %v26 = vld [vmem:[#allocation2] sm:$0xff]
    %v27 = vld [vmem:[#allocation2 + $0x8] sm:$0xff]
    %v28 = vld [vmem:[#allocation2 + $0x10] sm:$0xff]
    %v29 = vld [vmem:[#allocation2 + $0x18] sm:$0xff]
    %v30 = vld [vmem:[#allocation2 + $0x20] sm:$0xff]
    %v31 = vld [vmem:[#allocation2 + $0x28] sm:$0xff]
    %v32 = vld [vmem:[#allocation2 + $0x30] sm:$0xff]
    %v33 = vld [vmem:[#allocation2 + $0x38] sm:$0xff]
    %v34 = vld [vmem:[#allocation2 + $0x40] sm:$0xff]
    %v35 = vld [vmem:[#allocation2 + $0x48] sm:$0xff]
    %v36 = vld [vmem:[#allocation2 + $0x50] sm:$0xff]
    %v37 = vld [vmem:[#allocation2 + $0x58] sm:$0xff]
    %v38 = vld [vmem:[#allocation2 + $0x60] sm:$0xff]
    %v39 = vld [vmem:[#allocation2 + $0x68] sm:$0xff]
    %v40 = vld [vmem:[#allocation2 + $0x70] sm:$0xff]
    %v41 = vld [vmem:[#allocation2 + $0x78] sm:$0xff]
    %v42 = vld [vmem:[#allocation2 + $0x80] sm:$0xff]
    %v43 = vld [vmem:[#allocation2 + $0x88] sm:$0xff]
    %v44 = vld [vmem:[#allocation2 + $0x90] sm:$0xff]
    %v45 = vld [vmem:[#allocation2 + $0x98] sm:$0xff]
    %v46 = vld [vmem:[#allocation2 + $0xa0] sm:$0xff]
    %v47 = vld [vmem:[#allocation2 + $0xa8] sm:$0xff]
    %v48 = vld [vmem:[#allocation2 + $0xb0] sm:$0xff]
    %v49 = vld [vmem:[#allocation2 + $0xb8] sm:$0xff]
    %v50 = vld [vmem:[#allocation2 + $0xc0] sm:$0xff]
    %v51 = vld [vmem:[#allocation2 + $0xc8] sm:$0xff]
    %v52 = vld [vmem:[#allocation2 + $0xd0] sm:$0xff]
    %v53 = vld [vmem:[#allocation2 + $0xd8] sm:$0xff]
    %v54 = vld [vmem:[#allocation2 + $0xe0] sm:$0xff]
    %v55 = vld [vmem:[#allocation2 + $0xe8] sm:$0xff]
    %v56 = vld [vmem:[#allocation2 + $0xf0] sm:$0xff]
    %v57 = vld [vmem:[#allocation2 + $0xf8] sm:$0xff]
    %v58 = vld [vmem:[#allocation2 + $0x100] sm:$0xff]
    %v59 = vld [vmem:[#allocation2 + $0x108] sm:$0xff]
    %v60 = vld [vmem:[#allocation2 + $0x110] sm:$0xff]
    %v61 = vlaneseq
    %v62 = vshrl.u32 %v61, 7
    %v63 = vsub.s32 0, %v62
    %v64 = vrot.slane %v60, %v63
    %vm65 = vcmask 130048
    %v67 = vsel %vm65, %v25, 0
    %69 = vmatprep.subr.mxu0 0.0
    %70 = vmatpush1.msra.mxu0 %v26
    %71 = vmatprep.subr.mxu0 0.0
    %72 = vmatpush1.msra.mxu0 %v27
    %73 = vmatprep.subr.mxu0 0.0
    %74 = vmatpush1.msra.mxu0 0.0
    %75 = vmatprep.subr.mxu0 0.0
    %76 = vmatpush1.msra.mxu0 0.0
    %77 = vmatprep.subr.mxu0 0.0
    %78 = vmatpush1.msra.mxu0 0.0
    %79 = vmatprep.subr.mxu0 0.0
    %80 = vmatpush1.msra.mxu0 0.0
    %81 = vmatprep.subr.mxu0 0.0
    %82 = vmatpush1.msra.mxu0 0.0
    %83 = vmatprep.subr.mxu0 0.0
    %84 = vmatpush1.msra.mxu0 0.0
    %85 = vmatprep.subr.mxu0 0.0
    %86 = vmatpush1.msra.mxu0 0.0
    %87 = vmatprep.subr.mxu0 0.0
    %88 = vmatpush1.msra.mxu0 0.0
    %89 = vmatprep.subr.mxu0 0.0
    %90 = vmatpush1.msra.mxu0 0.0
    %91 = vmatprep.subr.mxu0 0.0
    %92 = vmatpush1.msra.mxu0 0.0
    %93 = vmatprep.subr.mxu0 0.0
    %94 = vmatpush1.msra.mxu0 0.0
    %95 = vmatprep.subr.mxu0 0.0
    %96 = vmatpush1.msra.mxu0 0.0
    %97 = vmatprep.subr.mxu0 0.0
    %98 = vmatpush1.msra.mxu0 0.0
    %99 = vmatprep.subr.mxu0 0.0
    %100 = vmatpush1.msra.mxu0 0.0
    %101 = vmatprep.subr.mxu0 0.0
    %102 = vmatpush1.msra.mxu0 0.0
    %103 = vmatprep.subr.mxu0 0.0
    %104 = vmatpush1.msra.mxu0 0.0
    %105 = vmatprep.subr.mxu0 0.0
    %106 = vmatpush1.msra.mxu0 0.0
    %107 = vmatprep.subr.mxu0 0.0
    %108 = vmatpush1.msra.mxu0 0.0
    %109 = vmatprep.subr.mxu0 0.0
    %110 = vmatpush1.msra.mxu0 0.0
    %111 = vmatprep.subr.mxu0 0.0
    %112 = vmatpush1.msra.mxu0 0.0
    %113 = vmatprep.subr.mxu0 0.0
    %114 = vmatpush1.msra.mxu0 0.0
    %115 = vmatprep.subr.mxu0 0.0
    %116 = vmatpush1.msra.mxu0 0.0
    %117 = vmatprep.subr.mxu0 0.0
    %118 = vmatpush1.msra.mxu0 0.0
    %119 = vmatprep.subr.mxu0 0.0
    %120 = vmatpush1.msra.mxu0 0.0
    %121 = vmatprep.subr.mxu0 0.0
    %122 = vmatpush1.msra.mxu0 0.0
    %123 = vmatprep.subr.mxu0 0.0
    %124 = vmatpush1.msra.mxu0 0.0
    %125 = vmatprep.subr.mxu0 0.0
    %126 = vmatpush1.msra.mxu0 0.0
    %127 = vmatprep.subr.mxu0 0.0
    %128 = vmatpush1.msra.mxu0 0.0
    %129 = vmatprep.subr.mxu0 0.0
    %130 = vmatpush1.msra.mxu0 0.0
    %131 = vmatprep.subr.mxu0 0.0
    %132 = vmatpush1.msra.mxu0 0.0
    %133 = vmatprep.mubr.f32.mxu0 0.0
    %134 = vmatmul.mubr.f32.gmra.mrb[0].mxu0 %v67
    %v135 = vpop.f32.mrb[0].mxu0
    %v136 = vadd.f32 %v64, %v135
    %v137 = vpop.f32.mrb[0].mxu0
    %138 = vdwg.mxu0
    %v139 = vtanh.pop %v136
    %v140 = vlaneseq
    %v141 = vshrl.u32 %v140, 7
    %v142 = vsub.s32 1, %v141
    %v143 = vrot.slane %v60, %v142
    %144 = vmatprep.subr.mxu0 0.0
    %145 = vmatpush1.msra.mxu0 %v28
    %146 = vmatprep.subr.mxu0 0.0
    %147 = vmatpush1.msra.mxu0 %v29
    %148 = vmatprep.subr.mxu0 0.0
    %149 = vmatpush1.msra.mxu0 %v30
    %150 = vmatprep.subr.mxu0 0.0
    %151 = vmatpush1.msra.mxu0 %v31
    %152 = vmatprep.subr.mxu0 0.0
    %153 = vmatpush1.msra.mxu0 %v32
    %154 = vmatprep.subr.mxu0 0.0
    %155 = vmatpush1.msra.mxu0 %v33
    %156 = vmatprep.subr.mxu0 0.0
    %157 = vmatpush1.msra.mxu0 %v34
    %158 = vmatprep.subr.mxu0 0.0
    %159 = vmatpush1.msra.mxu0 %v35
    %160 = vmatprep.subr.mxu0 0.0
    %161 = vmatpush1.msra.mxu0 %v36
    %162 = vmatprep.subr.mxu0 0.0
    %163 = vmatpush1.msra.mxu0 %v37
    %164 = vmatprep.subr.mxu0 0.0
    %165 = vmatpush1.msra.mxu0 %v38
    %166 = vmatprep.subr.mxu0 0.0
    %167 = vmatpush1.msra.mxu0 %v39
    %168 = vmatprep.subr.mxu0 0.0
    %169 = vmatpush1.msra.mxu0 %v40
    %170 = vmatprep.subr.mxu0 0.0
    %171 = vmatpush1.msra.mxu0 %v41
    %172 = vmatprep.subr.mxu0 0.0
    %173 = vmatpush1.msra.mxu0 %v42
    %174 = vmatprep.subr.mxu0 0.0
    %175 = vmatpush1.msra.mxu0 %v43
    %176 = vmatprep.subr.mxu0 0.0
    %177 = vmatpush1.msra.mxu0 0.0
    %178 = vmatprep.subr.mxu0 0.0
    %179 = vmatpush1.msra.mxu0 0.0
    %180 = vmatprep.subr.mxu0 0.0
    %181 = vmatpush1.msra.mxu0 0.0
    %182 = vmatprep.subr.mxu0 0.0
    %183 = vmatpush1.msra.mxu0 0.0
    %184 = vmatprep.subr.mxu0 0.0
    %185 = vmatpush1.msra.mxu0 0.0
    %186 = vmatprep.subr.mxu0 0.0
    %187 = vmatpush1.msra.mxu0 0.0
    %188 = vmatprep.subr.mxu0 0.0
    %189 = vmatpush1.msra.mxu0 0.0
    %190 = vmatprep.subr.mxu0 0.0
    %191 = vmatpush1.msra.mxu0 0.0
    %192 = vmatprep.subr.mxu0 0.0
    %193 = vmatpush1.msra.mxu0 0.0
    %194 = vmatprep.subr.mxu0 0.0
    %195 = vmatpush1.msra.mxu0 0.0
    %196 = vmatprep.subr.mxu0 0.0
    %197 = vmatpush1.msra.mxu0 0.0
    %198 = vmatprep.subr.mxu0 0.0
    %199 = vmatpush1.msra.mxu0 0.0
    %200 = vmatprep.subr.mxu0 0.0
    %201 = vmatpush1.msra.mxu0 0.0
    %202 = vmatprep.subr.mxu0 0.0
    %203 = vmatpush1.msra.mxu0 0.0
    %204 = vmatprep.subr.mxu0 0.0
    %205 = vmatpush1.msra.mxu0 0.0
    %206 = vmatprep.subr.mxu0 0.0
    %207 = vmatpush1.msra.mxu0 0.0
    %208 = vmatprep.mubr.f32.mxu0 0.0
    %209 = vmatmul.mubr.f32.gmra.mrb[0].mxu0 %v139
    %v210 = vpop.f32.mrb[0].mxu0
    %v211 = vadd.f32 %v143, %v210
    %v212 = vpop.f32.mrb[0].mxu0
    %213 = vdwg.mxu0
    %v214 = vtanh.pop %v211
    %v215 = vlaneseq
    %v216 = vshrl.u32 %v215, 7
    %v217 = vsub.s32 2, %v216
    %v218 = vrot.slane %v60, %v217
    %219 = vmatprep.subr.mxu0 0.0
    %220 = vmatpush1.msra.mxu0 %v44
    %221 = vmatprep.subr.mxu0 0.0
    %222 = vmatpush1.msra.mxu0 %v45
    %223 = vmatprep.subr.mxu0 0.0
    %224 = vmatpush1.msra.mxu0 %v46
    %225 = vmatprep.subr.mxu0 0.0
    %226 = vmatpush1.msra.mxu0 %v47
    %227 = vmatprep.subr.mxu0 0.0
    %228 = vmatpush1.msra.mxu0 %v48
    %229 = vmatprep.subr.mxu0 0.0
    %230 = vmatpush1.msra.mxu0 %v49
    %231 = vmatprep.subr.mxu0 0.0
    %232 = vmatpush1.msra.mxu0 %v50
    %233 = vmatprep.subr.mxu0 0.0
    %234 = vmatpush1.msra.mxu0 %v51
    %235 = vmatprep.subr.mxu0 0.0
    %236 = vmatpush1.msra.mxu0 %v52
    %237 = vmatprep.subr.mxu0 0.0
    %238 = vmatpush1.msra.mxu0 %v53
    %239 = vmatprep.subr.mxu0 0.0
    %240 = vmatpush1.msra.mxu0 %v54
    %241 = vmatprep.subr.mxu0 0.0
    %242 = vmatpush1.msra.mxu0 %v55
    %243 = vmatprep.subr.mxu0 0.0
    %244 = vmatpush1.msra.mxu0 %v56
    %245 = vmatprep.subr.mxu0 0.0
    %246 = vmatpush1.msra.mxu0 %v57
    %247 = vmatprep.subr.mxu0 0.0
    %248 = vmatpush1.msra.mxu0 %v58
    %249 = vmatprep.subr.mxu0 0.0
    %250 = vmatpush1.msra.mxu0 %v59
    %251 = vmatprep.subr.mxu0 0.0
    %252 = vmatpush1.msra.mxu0 0.0
    %253 = vmatprep.subr.mxu0 0.0
    %254 = vmatpush1.msra.mxu0 0.0
    %255 = vmatprep.subr.mxu0 0.0
    %256 = vmatpush1.msra.mxu0 0.0
    %257 = vmatprep.subr.mxu0 0.0
    %258 = vmatpush1.msra.mxu0 0.0
    %259 = vmatprep.subr.mxu0 0.0
    %260 = vmatpush1.msra.mxu0 0.0
    %261 = vmatprep.subr.mxu0 0.0
    %262 = vmatpush1.msra.mxu0 0.0
    %263 = vmatprep.subr.mxu0 0.0
    %264 = vmatpush1.msra.mxu0 0.0
    %265 = vmatprep.subr.mxu0 0.0
    %266 = vmatpush1.msra.mxu0 0.0
    %267 = vmatprep.subr.mxu0 0.0
    %268 = vmatpush1.msra.mxu0 0.0
    %269 = vmatprep.subr.mxu0 0.0
    %270 = vmatpush1.msra.mxu0 0.0
    %271 = vmatprep.subr.mxu0 0.0
    %272 = vmatpush1.msra.mxu0 0.0
    %273 = vmatprep.subr.mxu0 0.0
    %274 = vmatpush1.msra.mxu0 0.0
    %275 = vmatprep.subr.mxu0 0.0
    %276 = vmatpush1.msra.mxu0 0.0
    %277 = vmatprep.subr.mxu0 0.0
    %278 = vmatpush1.msra.mxu0 0.0
    %279 = vmatprep.subr.mxu0 0.0
    %280 = vmatpush1.msra.mxu0 0.0
    %281 = vmatprep.subr.mxu0 0.0
    %282 = vmatpush1.msra.mxu0 0.0
    %283 = vmatprep.mubr.f32.mxu0 0.0
    %284 = vmatmul.mubr.f32.gmra.mrb[0].mxu0 %v214
    %v285 = vpop.f32.mrb[0].mxu0
    %v286 = vadd.f32 %v218, %v285
    %v287 = vpop.f32.mrb[0].mxu0
    %288 = vdwg.mxu0
    %289 = vst [vmem:[%s2] sm:$0xff] %v286
    // Predicated region
    $region14: #{_lambda_.1} parent=1 // pred_check
      _
    $region15: #{_lambda_.1} parent=1 // pred_check_branch
      %291 = sbr.rel (0) target = $region17
    $region16: #{_lambda_.1} parent=1 // pred_region
      _
    $region17: #{_lambda_.1} parent=1 // pred_fallthru
      _
    // Predicated region
    $region18: #{_lambda_.1} parent=1 // pred_check
      _
    $region19: #{_lambda_.1} parent=1 // pred_check_branch
      %293 = sbr.rel (0) target = $region21
    $region20: #{_lambda_.1} parent=1 // pred_region
      _
    $region21: #{_lambda_.1} parent=1 // pred_fallthru
      _
    %294 = vsyncpa [#allocation3], 1

</llo_original>
